<compile_context>
chip_gen: v5e
topology: v5e:2x2
jax: 0.10.0
libtpu: 0.0.40
codegen_flags: <defaults>
</compile_context>

<pallas_src>
import jax
import jax.numpy as jnp
from jax.experimental import pallas as pl
from jax.experimental.pallas import tpu as pltpu


def _transition_kernel(x_ref, scale_ref, shift_ref, w_ref, o_ref):
    # x_ref:     (1, TP, 4*Cin)    bf16 window-fused tile; col (2*dh+dw)*Cin + c
    # scale_ref: (1, 4*Cin)        f32 folded BN scale, tiled 4x along the fused-K axis
    # shift_ref: (1, 4*Cin)        f32 folded BN shift, tiled 4x
    # w_ref:     (4*Cin, Cout_pad) bf16, 0.25 * tile(conv_w, 4) zero-padded lane-dense in Cout
    # o_ref:     (1, TP, Cout_pad) bf16 output tile (lane-dense, unmasked stores)
    x = x_ref[0].astype(jnp.float32)                       # BN/ReLU in f32 (v5e VPU has no bf16)
    a = jnp.maximum(x * scale_ref[...] + shift_ref[...], 0.0)
    # BN -> ReLU -> pool -> conv, with the 2x2 average folded into the contraction.
    y = jnp.dot(a.astype(jnp.bfloat16), w_ref[...],
                preferred_element_type=jnp.float32)        # (TP, Cout_pad), f32 accumulate on MXU
    o_ref[0] = y.astype(o_ref.dtype)


def _pick_tile_p(hwp, c4, cout_pad, budget_bytes=12 << 20, max_tile=1024):
    """Byte-budgeted pooled-pixel tile (multiple of 8 sublanes).

    Budget covers double-buffered bf16 x tile, double-buffered bf16 out tile, the resident
    weight, and the in-kernel f32 intermediates; 12 MiB fits the v5e 16 MiB scoped default with
    headroom and is far below v6e/v7x limits.  Tiles beyond ~1024 rows stop helping anyway.
    """
    w_bytes = c4 * cout_pad * 2                                  # weight (constant index_map)
    per_row = 2 * c4 * 2 + 2 * cout_pad * 2 + 2 * c4 * 4        # x(bf16,2x) + out(bf16,2x) + f32 temps
    tp = max(8, (budget_bytes - w_bytes) // per_row)
    tp = min(tp, max_tile)
    tp = min(tp, ((hwp + 7) // 8) * 8)
    return max(8, (tp // 8) * 8)


def transition_layer(x_nchw, gamma, beta, conv_w, eps=1e-5):
    """Pallas implementation of TransitionLayer.forward.  x_nchw: (N, Cin, H, W) float32."""
    N, Cin, H, W = x_nchw.shape
    Cout = conv_w.shape[0]
    assert H % 2 == 0 and W % 2 == 0, "AvgPool2d(2, stride=2) requires even H and W"
    Hp, Wp = H // 2, W // 2
    HWp = Hp * Wp
    C4 = 4 * Cin

    # --- glue: fold training-mode BatchNorm2d batch statistics into scale/shift ---
    mean = jnp.mean(x_nchw, axis=(0, 2, 3))                      # per-channel
    var = jnp.var(x_nchw, axis=(0, 2, 3))                        # biased variance (PyTorch BN)
    scale = (gamma / jnp.sqrt(var + eps)).astype(jnp.float32)
    shift = (beta - mean * scale).astype(jnp.float32)
    scale4 = jnp.tile(scale, 4).reshape(1, C4)                   # fused-K axis: [s, s, s, s]
    shift4 = jnp.tile(shift, 4).reshape(1, C4)

    # --- glue: window-fused channels-last layout (N, Hp*Wp, 4*Cin), bf16 ---
    # x_fused[n, oh*Wp+ow, (2*dh+dw)*Cin + c] == x[n, c, 2*oh+dh, 2*ow+dw]
    # TODO(synk): fuse the BN-stat reduction with this gather (or read NHWC directly in-kernel
    # with strided pl.ds) so x is read from HBM only ~2x end-to-end; the kernel itself is HBM-bound.
    x_fused = (jnp.transpose(x_nchw, (0, 2, 3, 1))
               .reshape(N, Hp, 2, Wp, 2, Cin)
               .transpose(0, 1, 3, 2, 4, 5)
               .reshape(N, HWp, C4)
               .astype(jnp.bfloat16))

    # --- glue: 1x1 conv weight -> (4*Cin, Cout_pad) bf16 with the 2x2-avg 0.25 folded in ---
    Cout_pad = max(128, ((Cout + 127) // 128) * 128)             # lane-dense -> unmasked vst
    w = conv_w.reshape(Cout, Cin).T.astype(jnp.float32)          # (Cin, Cout)
    w_rep = (0.25 * jnp.tile(w, (4, 1))).astype(jnp.bfloat16)    # (4*Cin, Cout)
    w_pad = jnp.zeros((C4, Cout_pad), jnp.bfloat16).at[:, :Cout].set(w_rep)

    tile_p = _pick_tile_p(HWp, C4, Cout_pad)
    HWp_pad = -(-HWp // tile_p) * tile_p                         # pad instead of divisor fallback
    if HWp_pad != HWp:
        x_fused = jnp.pad(x_fused, ((0, 0), (0, HWp_pad - HWp), (0, 0)))

    grid = (N, HWp_pad // tile_p)

    # Explicit VMEM limit: generous but <= 48 MiB, so it is safe on v7x's 64 MiB physical VMEM
    # while raising the v5e/v6e scoped defaults when a larger Cin needs it.
    buf_bytes = (2 * tile_p * C4 * 2 + 2 * tile_p * Cout_pad * 2
                 + C4 * Cout_pad * 2 + 2 * tile_p * C4 * 4)
    vmem_limit = int(min(max(2 * buf_bytes, 32 << 20), 48 << 20))

    out_flat = pl.pallas_call(
        _transition_kernel,
        out_shape=jax.ShapeDtypeStruct((N, HWp_pad, Cout_pad), jnp.bfloat16),
        grid=grid,
        in_specs=[
            pl.BlockSpec((1, tile_p, C4), lambda n, t: (n, t, 0)),
            pl.BlockSpec((1, C4), lambda n, t: (0, 0)),
            pl.BlockSpec((1, C4), lambda n, t: (0, 0)),
            pl.BlockSpec((C4, Cout_pad), lambda n, t: (0, 0)),
        ],
        out_specs=pl.BlockSpec((1, tile_p, Cout_pad), lambda n, t: (n, t, 0)),
        compiler_params=pltpu.CompilerParams(
            dimension_semantics=("parallel", "parallel"),
            vmem_limit_bytes=vmem_limit),
    )(x_fused, scale4, shift4, w_pad)

    # --- glue: strip Cout / HWp padding, back to NCHW f32 ---
    return (out_flat[:, :HWp, :Cout]
            .astype(jnp.float32)
            .reshape(N, Hp, Wp, Cout)
            .transpose(0, 3, 1, 2))


def _reference(x, gamma, beta, conv_w, eps=1e-5):
    """Pure-JAX f32 reference mirroring the PyTorch forward (training-mode BN)."""
    mean = jnp.mean(x, axis=(0, 2, 3), keepdims=True)
    var = jnp.var(x, axis=(0, 2, 3), keepdims=True)
    h = (x - mean) / jnp.sqrt(var + eps) * gamma[None, :, None, None] + beta[None, :, None, None]
    h = jnp.maximum(h, 0.0)
    y = jnp.einsum("nchw,oc->nohw", h, conv_w.reshape(conv_w.shape[0], conv_w.shape[1]))
    N, Co, H, W = y.shape
    y = y.reshape(N, Co, H // 2, 2, W // 2, 2).mean(axis=(3, 5))
    return y


if __name__ == "__main__":
    key = jax.random.PRNGKey(0)
    k_x, k_w = jax.random.split(key)

    N, Cin, H, W = 2, 4, 16, 16
    Cout = 2  # DenseNet transition typically halves channels

    x = jax.random.normal(k_x, (N, Cin, H, W), jnp.float32)

    # Deterministic parameter init (shapes from nn.BatchNorm2d / nn.Conv2d(..., 1, bias=False))
    gamma = jnp.ones((Cin,), jnp.float32)   # BN weight default init
    beta = jnp.zeros((Cin,), jnp.float32)   # BN bias default init
    bound = 1.0 / (Cin ** 0.5)              # kaiming_uniform-style bound for a 1x1 conv
    conv_w = jax.random.uniform(k_w, (Cout, Cin, 1, 1), jnp.float32, -bound, bound)

    out = transition_layer(x, gamma, beta, conv_w)
    out = jax.block_until_ready(out)

    ref = _reference(x, gamma, beta, conv_w)
    assert out.shape == (N, Cout, H // 2, W // 2), out.shape
    # bf16 input + bf16 MXU LHS + bf16 output store (f32 accumulate): tolerance relaxed accordingly.
    max_err = float(jnp.max(jnp.abs(out - ref)))
    assert jnp.allclose(out, ref, atol=5e-2, rtol=5e-2), max_err

    print("KERNEL_OK")
</pallas_src>

<mosaic_0001>
module attributes {stable_mosaic.version = 11 : i64} {
  func.func @_transition_kernel(%arg0: i32, %arg1: i32, %arg2: memref<1x64x16xbf16, #tpu.memory_space<vmem>>, %arg3: memref<1x16xf32, #tpu.memory_space<vmem>>, %arg4: memref<1x16xf32, #tpu.memory_space<vmem>>, %arg5: memref<16x128xbf16, #tpu.memory_space<vmem>>, %arg6: memref<1x64x128xbf16, #tpu.memory_space<vmem>>) attributes {dimension_semantics = [#tpu.dimension_semantics<parallel>, #tpu.dimension_semantics<parallel>], iteration_bounds = array<i64: 2, 1>, scalar_prefetch = 0 : i64, scratch_operands = 0 : i64, tpu.core_type = #tpu.core_type<tc>, window_params = [{transform_indices = @transform_0, window_bounds = array<i64: 1, 64, 16>}, {pipeline_mode = #tpu.pipeline_mode<synchronous>, transform_indices = @transform_1, window_bounds = array<i64: 1, 16>}, {pipeline_mode = #tpu.pipeline_mode<synchronous>, transform_indices = @transform_2, window_bounds = array<i64: 1, 16>}, {pipeline_mode = #tpu.pipeline_mode<synchronous>, transform_indices = @transform_3, window_bounds = array<i64: 16, 128>}, {transform_indices = @transform_4, window_bounds = array<i64: 1, 64, 128>}]} {
    %c0 = arith.constant 0 : index
    %c0_0 = arith.constant 0 : index
    %c0_1 = arith.constant 0 : index
    %0 = vector.load %arg2[%c0, %c0_0, %c0_1] : memref<1x64x16xbf16, #tpu.memory_space<vmem>>, vector<1x64x16xbf16>
    %1 = vector.shape_cast %0 : vector<1x64x16xbf16> to vector<64x16xbf16>
    %2 = arith.extf %1 : vector<64x16xbf16> to vector<64x16xf32>
    %c0_2 = arith.constant 0 : index
    %c0_3 = arith.constant 0 : index
    %3 = vector.load %arg3[%c0_2, %c0_3] : memref<1x16xf32, #tpu.memory_space<vmem>>, vector<1x16xf32>
    %4 = vector.broadcast %3 : vector<1x16xf32> to vector<64x16xf32>
    %5 = arith.mulf %2, %4 : vector<64x16xf32>
    %c0_4 = arith.constant 0 : index
    %c0_5 = arith.constant 0 : index
    %6 = vector.load %arg4[%c0_4, %c0_5] : memref<1x16xf32, #tpu.memory_space<vmem>>, vector<1x16xf32>
    %7 = vector.broadcast %6 : vector<1x16xf32> to vector<64x16xf32>
    %8 = arith.addf %5, %7 : vector<64x16xf32>
    %cst = arith.constant 0.000000e+00 : f32
    %9 = vector.broadcast %cst : f32 to vector<64x16xf32>
    %10 = arith.maximumf %8, %9 : vector<64x16xf32>
    %11 = arith.truncf %10 : vector<64x16xf32> to vector<64x16xbf16>
    %c0_6 = arith.constant 0 : index
    %c0_7 = arith.constant 0 : index
    %12 = vector.load %arg5[%c0_6, %c0_7] : memref<16x128xbf16, #tpu.memory_space<vmem>>, vector<16x128xbf16>
    %cst_8 = arith.constant dense<0.000000e+00> : vector<64x128xf32>
    %13 = tpu.matmul %11, %12, %cst_8 {dimension_numbers = #tpu.dot_dimension_numbers<[1], [0], [0], [1], [0, 0, 1, 1], [], []>} : vector<64x16xbf16>, vector<16x128xbf16>, vector<64x128xf32> -> vector<64x128xf32>
    %14 = arith.truncf %13 : vector<64x128xf32> to vector<64x128xbf16>
    %c0_9 = arith.constant 0 : index
    %c0_10 = arith.constant 0 : index
    %c0_11 = arith.constant 0 : index
    %15 = vector.load %arg6[%c0_9, %c0_10, %c0_11] : memref<1x64x128xbf16, #tpu.memory_space<vmem>>, vector<1x64x128xbf16>
    %16 = vector.shape_cast %15 : vector<1x64x128xbf16> to vector<64x128xbf16>
    %17 = vector.shape_cast %14 : vector<64x128xbf16> to vector<1x64x128xbf16>
    tpu.vector_store %arg6[%c0_9, %c0_10, %c0_11], %17 {strides = array<i32>} : memref<1x64x128xbf16, #tpu.memory_space<vmem>>, vector<1x64x128xbf16>,
    return
  }
  func.func @transform_0(%arg0: i32, %arg1: i32) -> (i32, i32, i32) {
    %c0_i32 = arith.constant 0 : i32
    %c0_i32_0 = arith.constant 0 : i32
    return %arg0, %arg1, %c0_i32 : i32, i32, i32
  }
  func.func @transform_1(%arg0: i32, %arg1: i32) -> (i32, i32) {
    %c0_i32 = arith.constant 0 : i32
    %c0_i32_0 = arith.constant 0 : i32
    %c0_i32_1 = arith.constant 0 : i32
    return %c0_i32, %c0_i32_0 : i32, i32
  }
  func.func @transform_2(%arg0: i32, %arg1: i32) -> (i32, i32) {
    %c0_i32 = arith.constant 0 : i32
    %c0_i32_0 = arith.constant 0 : i32
    %c0_i32_1 = arith.constant 0 : i32
    return %c0_i32, %c0_i32_0 : i32, i32
  }
  func.func @transform_3(%arg0: i32, %arg1: i32) -> (i32, i32) {
    %c0_i32 = arith.constant 0 : i32
    %c0_i32_0 = arith.constant 0 : i32
    %c0_i32_1 = arith.constant 0 : i32
    return %c0_i32, %c0_i32_0 : i32, i32
  }
  func.func @transform_4(%arg0: i32, %arg1: i32) -> (i32, i32, i32) {
    %c0_i32 = arith.constant 0 : i32
    %c0_i32_0 = arith.constant 0 : i32
    return %arg0, %arg1, %c0_i32 : i32, i32, i32
  }
}

</mosaic_0001>

<llo_original>
// kernel: tpu_custom_call.1
$region0: #{tpu_custom_call.1}
  #allocation0 [shape = 'u32[]', space=smem, size = 0x4, offset = 0x4, fixed_abs, tag = 'smem constant byte address 0x4 - core index']
  #allocation1 [shape = 'u32[72,128]{1,0:T(1,128)}', space=vmem, size = 0x9000, scoped, tag = 'internal scratch']
  %s0 = inlined_call_operand.vmem [shape: bf16[2,64,16], index: 0, kind: input, shape index: {}]
  %s1 = inlined_call_operand.vmem [shape: f32[1,16], index: 1, kind: input, shape index: {}]
  %s2 = inlined_call_operand.vmem [shape: f32[1,16], index: 2, kind: input, shape index: {}]
  %s3 = inlined_call_operand.vmem [shape: bf16[16,128], index: 3, kind: input, shape index: {}]
  %s4 = inlined_call_operand.hbm [shape: bf16[2,64,128], index: 4, kind: output, shape index: {}]
  %s5 = sld [smem:[#allocation0]]
  $region49: #{tpu_custom_call.1} parent=0
    _
  %s7 = ssub.s32 1, %s5
  %s8 = scalar_select 0, %s7, %s5
  $region1: #{tpu_custom_call.1} parent=0
    #allocation2 [shape = 'u8[32768]{0}', space=vmem, size = 0x8000, scoped, tag = 'output window, operand 0']
    #allocation3 [shape = 's32[2]{0}', space=sflag, size = 0x8, scoped, tag = 'scoped memory for tpu_custom_call.1']
    %9 = vsyncpa [#allocation3], 0
    %s10 = scalar_lea.sflag [#allocation3], 1
    %11 = vsyncpa %s10, 0
    loop: start=0, step=1, limit=4
    $region2: #{tpu_custom_call.1} parent=1 // loop_pre_header
      _
    $region3: #{tpu_custom_call.1} parent=1 // loop_header
      %s13 = sphi 0, %s17
      %p14 = scmp.ge.s32.totalorder %s13, 4
      %s20 = sphi 0, %s32
      %s21 = sphi 0, %s28
      %s22 = sphi 0, %s20
      %s23 = sphi 0, %s21
      %s24 = sphi 0, %s22
      %s25 = sphi 0, %s23
      %s37 = sphi 0, %s39
      %s40 = sphi 0, %s37
      %s41 = sphi 0, %s40
      %s57 = sphi 0, %s41
      %s61 = sphi 0, %s61
      %s63 = sphi 0, %s61
      %s64 = sphi 0, %s63
      %s78 = sphi 0, %s64
      %s82 = sphi 0, %s82
      %s84 = sphi 0, %s82
      %s85 = sphi 0, %s84
      %s99 = sphi 0, %s85
      %s103 = sphi 0, %s103
      %s105 = sphi 0, %s103
      %s106 = sphi 0, %s105
      %s120 = sphi 0, %s106
      %s128 = sphi 0, %s130
      %s131 = sphi 0, %s128
      %s132 = sphi 0, %s131
      %s148 = sphi 0, %s132
    $region4: #{tpu_custom_call.1} parent=1 // loop_header_branch
      %16 = sbr.rel (%p14) target = $region8
    $region5: #{tpu_custom_call.1} parent=1 // loop_body
      %s18 = ssub.s32 %s13, 1
      %s19 = ssub.s32 %s13, 2
      %s26 = sadd.s32 1, %s21
      %p27 = scmp.ge.s32.totalorder %s26, 1
      %s28 = scalar_select %p27, 0, %s26
      %s29 = sadd.s32 1, %s20
      %s30 = scalar_select %p27, %s29, %s20
      %p31 = scmp.ge.s32.totalorder %s30, 2
      %s32 = scalar_select %p31, 0, %s30
      %s33 = ssub.s32 %s20, %s32
      %s34 = ssub.s32 %s21, %s28
      %s35 = sor.u32 %s33, %s34
      %p36 = scmp.eq.s32.totalorder %s35, 0
      %s38 = sadd.s32 %s37, 1
      %s39 = scalar_select %p36, %s37, %s38
      %p42 = pneg %p36
      %p43 = scmp.eq.s32.totalorder %s13, 1
      %p44 = por %p42, %p43
      %p45 = scmp.ne.s32.totalorder %s37, %s40
      %p46 = scmp.eq.s32.totalorder %s13, 0
      %p47 = por %p45, %p46
      %p48 = scmp.ne.s32.totalorder %s37, %s40
      %p49 = scmp.eq.s32.totalorder %s18, 1
      %p50 = por %p48, %p49
      %p51 = scmp.ne.s32.totalorder %s40, %s41
      %p52 = scmp.eq.s32.totalorder %s18, 0
      %p53 = por %p51, %p52
      %p54 = scmp.ne.s32.totalorder %s40, %s41
      %p55 = scmp.eq.s32.totalorder %s19, 1
      %p56 = por %p54, %p55
      %p58 = scmp.ne.s32.totalorder %s41, %s57
      %p59 = scmp.eq.s32.totalorder %s19, 0
      %p60 = por %p58, %p59
      %s62 = sadd.s32 %s61, 1
      %p65 = scmp.eq.s32.totalorder %s13, 1
      %p66 = scmp.ne.s32.totalorder %s61, %s63
      %p67 = scmp.eq.s32.totalorder %s13, 0
      %p68 = por %p66, %p67
      %p69 = scmp.ne.s32.totalorder %s61, %s63
      %p70 = scmp.eq.s32.totalorder %s18, 1
      %p71 = por %p69, %p70
      %p72 = scmp.ne.s32.totalorder %s63, %s64
      %p73 = scmp.eq.s32.totalorder %s18, 0
      %p74 = por %p72, %p73
      %p75 = scmp.ne.s32.totalorder %s63, %s64
      %p76 = scmp.eq.s32.totalorder %s19, 1
      %p77 = por %p75, %p76
      %p79 = scmp.ne.s32.totalorder %s64, %s78
      %p80 = scmp.eq.s32.totalorder %s19, 0
      %p81 = por %p79, %p80
      %s83 = sadd.s32 %s82, 1
      %p86 = scmp.eq.s32.totalorder %s13, 1
      %p87 = scmp.ne.s32.totalorder %s82, %s84
      %p88 = scmp.eq.s32.totalorder %s13, 0
      %p89 = por %p87, %p88
      %p90 = scmp.ne.s32.totalorder %s82, %s84
      %p91 = scmp.eq.s32.totalorder %s18, 1
      %p92 = por %p90, %p91
      %p93 = scmp.ne.s32.totalorder %s84, %s85
      %p94 = scmp.eq.s32.totalorder %s18, 0
      %p95 = por %p93, %p94
      %p96 = scmp.ne.s32.totalorder %s84, %s85
      %p97 = scmp.eq.s32.totalorder %s19, 1
      %p98 = por %p96, %p97
      %p100 = scmp.ne.s32.totalorder %s85, %s99
      %p101 = scmp.eq.s32.totalorder %s19, 0
      %p102 = por %p100, %p101
      %s104 = sadd.s32 %s103, 1
      %p107 = scmp.eq.s32.totalorder %s13, 1
      %p108 = scmp.ne.s32.totalorder %s103, %s105
      %p109 = scmp.eq.s32.totalorder %s13, 0
      %p110 = por %p108, %p109
      %p111 = scmp.ne.s32.totalorder %s103, %s105
      %p112 = scmp.eq.s32.totalorder %s18, 1
      %p113 = por %p111, %p112
      %p114 = scmp.ne.s32.totalorder %s105, %s106
      %p115 = scmp.eq.s32.totalorder %s18, 0
      %p116 = por %p114, %p115
      %p117 = scmp.ne.s32.totalorder %s105, %s106
      %p118 = scmp.eq.s32.totalorder %s19, 1
      %p119 = por %p117, %p118
      %p121 = scmp.ne.s32.totalorder %s106, %s120
      %p122 = scmp.eq.s32.totalorder %s19, 0
      %p123 = por %p121, %p122
      %s124 = ssub.s32 %s20, %s32
      %s125 = ssub.s32 %s21, %s28
      %s126 = sor.u32 %s124, %s125
      %p127 = scmp.eq.s32.totalorder %s126, 0
      %s129 = sadd.s32 %s128, 1
      %s130 = scalar_select %p127, %s128, %s129
      %p133 = pneg %p127
      %p134 = scmp.eq.s32.totalorder %s13, 1
      %p135 = por %p133, %p134
      %p136 = scmp.ne.s32.totalorder %s128, %s131
      %p137 = scmp.eq.s32.totalorder %s13, 0
      %p138 = por %p136, %p137
      %p139 = scmp.ne.s32.totalorder %s128, %s131
      %p140 = scmp.eq.s32.totalorder %s18, 1
      %p141 = por %p139, %p140
      %p142 = scmp.ne.s32.totalorder %s131, %s132
      %p143 = scmp.eq.s32.totalorder %s18, 0
      %p144 = por %p142, %p143
      %p145 = scmp.ne.s32.totalorder %s131, %s132
      %p146 = scmp.eq.s32.totalorder %s19, 1
      %p147 = por %p145, %p146
      %p149 = scmp.ne.s32.totalorder %s132, %s148
      %p150 = scmp.eq.s32.totalorder %s19, 0
      %p151 = por %p149, %p150
      %p152 = scmp.le.s32.totalorder 1, %s13
      %p153 = scmp.lt.s32.totalorder %s13, 3
      %p154 = pnand %p152, %p153
      %p155 = pneg %p154
      // Predicated region
      $region9: #{tpu_custom_call.1} parent=5 // pred_check
        _
      $region10: #{tpu_custom_call.1} parent=5 // pred_check_branch
        %157 = sbr.rel (%p154) target = $region12
      $region11: #{tpu_custom_call.1} parent=5 // pred_region
        %s158 = ssub.s32 %s13, 1
        // Predicated region
        $region13: #{tpu_custom_call.1} parent=11 // pred_check
          %p159 = pneg %p74
        $region14: #{tpu_custom_call.1} parent=11 // pred_check_branch
          %161 = sbr.rel (%p159) target = $region16
        $region15: #{tpu_custom_call.1} parent=11 // pred_region
          _
        $region16: #{tpu_custom_call.1} parent=11 // pred_fallthru
          _
        // Predicated region
        $region17: #{tpu_custom_call.1} parent=11 // pred_check
          %p162 = pneg %p95
        $region18: #{tpu_custom_call.1} parent=11 // pred_check_branch
          %164 = sbr.rel (%p162) target = $region20
        $region19: #{tpu_custom_call.1} parent=11 // pred_region
          _
        $region20: #{tpu_custom_call.1} parent=11 // pred_fallthru
          _
        // Predicated region
        $region21: #{tpu_custom_call.1} parent=11 // pred_check
          %p165 = pneg %p116
        $region22: #{tpu_custom_call.1} parent=11 // pred_check_branch
          %167 = sbr.rel (%p165) target = $region24
        $region23: #{tpu_custom_call.1} parent=11 // pred_region
          _
        $region24: #{tpu_custom_call.1} parent=11 // pred_fallthru
          _
      $region12: #{tpu_custom_call.1} parent=5 // pred_fallthru
        _
      %p168 = scmp.lt.s32.totalorder %s13, 2
      // Predicated region
      $region25: #{tpu_custom_call.1} parent=5 // pred_check
        %p169 = pneg %p168
      $region26: #{tpu_custom_call.1} parent=5 // pred_check_branch
        %171 = sbr.rel (%p169) target = $region28
      $region27: #{tpu_custom_call.1} parent=5 // pred_region
        // Predicated region
        $region29: #{tpu_custom_call.1} parent=27 // pred_check
          %p172 = pneg %p47
        $region30: #{tpu_custom_call.1} parent=27 // pred_check_branch
          %174 = sbr.rel (%p172) target = $region32
        $region31: #{tpu_custom_call.1} parent=27 // pred_region
          %s175 = smul.u32 8, %s21
          %p176 = scmp.lt.s32.totalorder %s20, 1
          %s177 = scalar_select %p176, %s20, 1
          %p178 = scmp.lt.s32.totalorder %s175, 7
          %s179 = scalar_select %p178, %s175, 7
          %s180 = smul.addr %s177, 8
          %s181 = sadd.s32 %s179, %s180
          %s182 = smul.addr %s181, 4
          %s183 = scalar_lea.vmem %s0, %s182
          %s184 = smul.u32 8, %s21
        $region32: #{tpu_custom_call.1} parent=27 // pred_fallthru
          _
      $region28: #{tpu_custom_call.1} parent=5 // pred_fallthru
        _
      %p185 = scmp.le.s32.totalorder 1, %s13
      %p186 = scmp.lt.s32.totalorder %s13, 3
      %p187 = pnand %p185, %p186
      %p188 = pneg %p187
      // Predicated region
      $region33: #{tpu_custom_call.1} parent=5 // pred_check
        _
      $region34: #{tpu_custom_call.1} parent=5 // pred_check_branch
        %190 = sbr.rel (%p187) target = $region36
      $region35: #{tpu_custom_call.1} parent=5 // pred_region
        %s191 = ssub.s32 %s13, 1
        %s192 = smul.u32 8, %s23
        %p193 = scmp.lt.s32.totalorder %s22, 1
        %s194 = scalar_select %p193, %s22, 1
        %p195 = scmp.lt.s32.totalorder %s192, 7
        %s196 = scalar_select %p195, %s192, 7
        %s197 = smul.addr %s194, 8
        %s198 = sadd.s32 %s196, %s197
        %s199 = smul.addr %s198, 4
        %s200 = scalar_lea.vmem %s0, %s199
        %p201 = pneg %p53
        %p202 = pneg %p50
        %p203 = pneg %p74
        %p204 = pneg %p71
        %p205 = pneg %p95
        %p206 = pneg %p92
        %p207 = pneg %p116
        %p208 = pneg %p113
        %p209 = pneg %p144
        %p210 = pneg %p141
        %s211 = sand.u32 %s131, 1
        %s212 = scalar_lea.sflag [#allocation3], %s211
        %s213 = sand.u32 %s131, 1
        %s214 = smul.addr %s213, 32
        %s215 = scalar_lea.vmem [#allocation2], %s214
        %s216 = smul.u32 8, %s23
        %p217 = scmp.lt.s32.totalorder %s22, 1
        %s218 = scalar_select %p217, %s22, 1
        %p219 = scmp.lt.s32.totalorder %s216, 7
        %s220 = scalar_select %p219, %s216, 7
        %s221 = smul.addr %s218, 8
        %s222 = sadd.s32 %s220, %s221
        %s223 = smul.addr %s222, 4
        %s224 = scalar_lea.vmem %s0, %s223
        %s225 = smul.u32 8, %s23
        %s226 = smul.u32 8, %s23
        %v228 = vld [vmem:[%s224] sm:$0xf]
        %v229 = vld [vmem:[%s224 + $0x4] sm:$0xf]
        %v230 = vld [vmem:[%s224 + $0x8] sm:$0xf]
        %v231 = vld [vmem:[%s224 + $0xc] sm:$0xf]
        %v232 = vld [vmem:[%s224 + $0x10] sm:$0xf]
        %v233 = vld [vmem:[%s224 + $0x14] sm:$0xf]
        %v234 = vld [vmem:[%s224 + $0x18] sm:$0xf]
        %v235 = vld [vmem:[%s224 + $0x1c] sm:$0xf]
        %v236 = vunpack.c.l.bf16 %v228
        %v237 = vunpack.c.l.bf16 %v229
        %v238 = vunpack.c.l.bf16 %v230
        %v239 = vunpack.c.l.bf16 %v231
        %v240 = vunpack.c.l.bf16 %v232
        %v241 = vunpack.c.l.bf16 %v233
        %v242 = vunpack.c.l.bf16 %v234
        %v243 = vunpack.c.l.bf16 %v235
        %v244 = vld [vmem:[%s1] sm:$0x1]
        %v246 = vperm.slane %v244, 0
        %v248 = vmul.f32 %v236, %v246
        %v249 = vmul.f32 %v237, %v246
        %v250 = vmul.f32 %v238, %v246
        %v251 = vmul.f32 %v239, %v246
        %v252 = vmul.f32 %v240, %v246
        %v253 = vmul.f32 %v241, %v246
        %v254 = vmul.f32 %v242, %v246
        %v255 = vmul.f32 %v243, %v246
        %v256 = vld [vmem:[%s2] sm:$0x1]
        %v258 = vperm.slane %v256, 0
        %v260 = vadd.f32 %v248, %v258
        %v261 = vadd.f32 %v249, %v258
        %v262 = vadd.f32 %v250, %v258
        %v263 = vadd.f32 %v251, %v258
        %v264 = vadd.f32 %v252, %v258
        %v265 = vadd.f32 %v253, %v258
        %v266 = vadd.f32 %v254, %v258
        %v267 = vadd.f32 %v255, %v258
        %v268 = vmax.f32 %v260, 0.0
        %v269 = vmax.f32 %v261, 0.0
        %v270 = vmax.f32 %v262, 0.0
        %v271 = vmax.f32 %v263, 0.0
        %v272 = vmax.f32 %v264, 0.0
        %v273 = vmax.f32 %v265, 0.0
        %v274 = vmax.f32 %v266, 0.0
        %v275 = vmax.f32 %v267, 0.0
        %v276 = vpack.c.bf16 %v269, %v268
        %v277 = vpack.c.bf16 %v271, %v270
        %v278 = vpack.c.bf16 %v273, %v272
        %v279 = vpack.c.bf16 %v275, %v274
        %v280 = vld [vmem:[%s3] sm:$0xf]
        %v281 = vld [vmem:[%s3 + $0x4] sm:$0xf]
        %v284 = vunpack.c.l.b16 %v280
        %v285 = vunpack.c.l.b16 %v281
        %v286 = vpack.c.b16 %v285, %v284
        %vm288 = vcmask 130048
        %v290 = vsel %vm288, %v276, 0
        %v293 = vsel %vm288, %v277, 0
        %v296 = vsel %vm288, %v278, 0
        %v299 = vsel %vm288, %v279, 0
        %301 = vmatpush.bf16.msra.mxu0 0
        %302 = vmatpush.bf16.msra.mxu0 0
        %303 = vmatpush.bf16.msra.mxu0 0
        %304 = vmatpush.bf16.msra.mxu0 0
        %305 = vmatpush.bf16.msra.mxu0 0
        %306 = vmatpush.bf16.msra.mxu0 0
        %307 = vmatpush.bf16.msra.mxu0 0
        %308 = vmatpush.bf16.msra.mxu0 %v286
        %309 = vmatmul.bf16.gmra.mxu0 %v290
        %v310 = vpop.f32.mrf.mxu0
        %v311 = vadd.f32 0.0, %v310
        %v312 = vpop.f32.mrf.mxu0
        %v313 = vadd.f32 0.0, %v312
        %314 = vmatmul.bf16.gmra.mxu0 %v293
        %v315 = vpop.f32.mrf.mxu0
        %v316 = vadd.f32 0.0, %v315
        %v317 = vpop.f32.mrf.mxu0
        %v318 = vadd.f32 0.0, %v317
        %319 = vmatmul.bf16.gmra.mxu0 %v296
        %v320 = vpop.f32.mrf.mxu0
        %v321 = vadd.f32 0.0, %v320
        %v322 = vpop.f32.mrf.mxu0
        %v323 = vadd.f32 0.0, %v322
        %324 = vmatmul.bf16.gmra.mxu0 %v299
        %v325 = vpop.f32.mrf.mxu0
        %v326 = vadd.f32 0.0, %v325
        %v327 = vpop.f32.mrf.mxu0
        %v328 = vadd.f32 0.0, %v327
        %329 = vdwg.mxu0
        %v330 = vpack.c.bf16 %v311, %v311
        %v331 = vpack.c.bf16 %v313, %v313
        %v332 = vpack.c.bf16 %v316, %v316
        %v333 = vpack.c.bf16 %v318, %v318
        %v334 = vpack.c.bf16 %v321, %v321
        %v335 = vpack.c.bf16 %v323, %v323
        %v336 = vpack.c.bf16 %v326, %v326
        %v337 = vpack.c.bf16 %v328, %v328
        %338 = vst [vmem:[%s215] sm:$0xf] %v330
        %339 = vst [vmem:[%s215 + $0x4] sm:$0xf] %v331
        %340 = vst [vmem:[%s215 + $0x8] sm:$0xf] %v332
        %341 = vst [vmem:[%s215 + $0xc] sm:$0xf] %v333
        %342 = vst [vmem:[%s215 + $0x10] sm:$0xf] %v334
        %343 = vst [vmem:[%s215 + $0x14] sm:$0xf] %v335
        %344 = vst [vmem:[%s215 + $0x18] sm:$0xf] %v336
        %345 = vst [vmem:[%s215 + $0x1c] sm:$0xf] %v337
        %s346 = sand.u32 %s131, 1
        %s347 = scalar_lea.sflag [#allocation3], %s346
        %s348 = sand.u32 %s131, 1
        %s349 = smul.addr %s348, 32
        %s350 = scalar_lea.vmem [#allocation2], %s349
        // Predicated region
        $region37: #{tpu_custom_call.1} parent=35 // pred_check
          %p351 = pneg %p141
        $region38: #{tpu_custom_call.1} parent=35 // pred_check_branch
          %353 = sbr.rel (%p351) target = $region40
        $region39: #{tpu_custom_call.1} parent=35 // pred_region
          %s354 = smul.u32 8, %s23
          %356 = vsyncadd %s347, 0
          %s357 = smul.addr %s22, 8
          %s358 = sadd.s32 %s354, %s357
          %s359 = smul.addr %s358, 4
          %s360 = scalar_lea.hbm %s4, %s359
          %s361 = sshll.u32 %s350, 4
          %s362 = int_to_ptr.vmem [resolvable:$true] %s361
          %s363 = sshll.u32 %s360, 4
          %s364 = int_to_ptr.hbm [resolvable:$true] %s363
          %369 = dma.vmem_to_hbm [thread:$0]  %s362, 512, %s364, %s347, 64, 64, 4
        $region40: #{tpu_custom_call.1} parent=35 // pred_fallthru
          _
      $region36: #{tpu_custom_call.1} parent=5 // pred_fallthru
        _
      %p370 = scmp.le.s32.totalorder 2, %s13
      // Predicated region
      $region41: #{tpu_custom_call.1} parent=5 // pred_check
        %p371 = pneg %p370
      $region42: #{tpu_custom_call.1} parent=5 // pred_check_branch
        %373 = sbr.rel (%p371) target = $region44
      $region43: #{tpu_custom_call.1} parent=5 // pred_region
        %s374 = ssub.s32 %s13, 2
        // Predicated region
        $region45: #{tpu_custom_call.1} parent=43 // pred_check
          %p375 = pneg %p147
        $region46: #{tpu_custom_call.1} parent=43 // pred_check_branch
          %377 = sbr.rel (%p375) target = $region48
        $region47: #{tpu_custom_call.1} parent=43 // pred_region
          %s378 = sand.u32 %s132, 1
          %s379 = scalar_lea.sflag [#allocation3], %s378
          %s380 = sand.u32 %s132, 1
          %s381 = smul.addr %s380, 32
          %s382 = scalar_lea.vmem [#allocation2], %s381
          %384 = dma.done %s379, 512
        $region48: #{tpu_custom_call.1} parent=43 // pred_fallthru
          _
      $region44: #{tpu_custom_call.1} parent=5 // pred_fallthru
        _
    $region6: #{tpu_custom_call.1} parent=1 // loop_footer
      %s17 = sadd.s32 1, %s13
    $region7: #{tpu_custom_call.1} parent=1 // loop_footer_branch
      %12 = sbr.rel target = $region3
    $region8: #{tpu_custom_call.1} parent=1 // loop_exit
      _
    %385 = vsyncpa [#allocation3], 1
    %s386 = scalar_lea.sflag [#allocation3], 1
    %387 = vsyncpa %s386, 1

</llo_original>
